<compile_context>
chip_gen: v6e
topology: v6e:2x2x1
jax: 0.10.0
libtpu: 0.0.40
codegen_flags: <defaults>
</compile_context>

<pallas_src>
from functools import partial

import numpy as np
import jax
import jax.numpy as jnp
from jax.experimental import pallas as pl
from jax.experimental.pallas import tpu as pltpu


_LANE = 128             # TPU lane width
_MAX_TILE_N = 131072    # max lanes per streamed tile of the fused output dim
                        # (index_dim=32 bf16 tile = 8 MiB; ~18 MiB double-buffered)


def _round_up(n, m):
    return ((n + m - 1) // m) * m


def _tiling(total_out):
    """Balanced tiling of the fused output dimension.

    Returns (tile_n, padded_total, grid_n) with:
      * tile_n a 128-multiple,
      * padded_total = grid_n * tile_n >= round_up(total_out, 128),
      * padding waste < 128 * grid_n columns (no "almost a full extra tile"),
      * grid_n >= 2 whenever there are >= 2 lane-columns of work, so the
        "parallel" grid axis can be sharded across two TensorCores.
    """
    total = max(int(total_out), 1)
    padded128 = _round_up(total, _LANE)
    grid_n = (padded128 + _MAX_TILE_N - 1) // _MAX_TILE_N
    if grid_n == 1 and padded128 >= 2 * _LANE:
        grid_n = 2                              # megacore: keep both TCs busy
    tile_n = _round_up((padded128 + grid_n - 1) // grid_n, _LANE)
    padded_total = grid_n * tile_n
    return tile_n, padded_total, grid_n


def _total_out(shapes):
    return sum(int(np.prod(s)) for sub in shapes for s in sub)


def _hypertorso_kernel(h_ref, w_ref, b_ref, out_ref):
    # h_ref:   (1, D)    bf16 hyper activation (constant across the grid)
    # w_ref:   (D, TN)   bf16 current tile of the concatenated output weights
    # b_ref:   (1, TN)   f32  current tile of the concatenated output biases
    # out_ref: (1, TN)   f32  current output tile
    out_ref[...] = (
        jnp.dot(h_ref[...], w_ref[...], preferred_element_type=jnp.float32)
        + b_ref[...]
    )


def init_params(key, index_dim, shapes, weight_dtype=jnp.bfloat16):
    """Deterministic init mimicking nn.Linear's U(-1/sqrt(in), 1/sqrt(in)).

    Weights are stored in `weight_dtype` (bf16 by default: halves HBM traffic for
    the bandwidth-bound kernel); biases stay f32.  The concatenated output weight
    and bias are padded along the output dim to the kernel's (balanced) tile
    granularity so every streamed tile is lane-dense; padding is < 128*grid_n
    columns and is sliced off in the wrapper.
    """
    bound = 1.0 / np.sqrt(index_dim)
    n_sub = sum(len(s) for s in shapes)
    keys = jax.random.split(key, 2 + 2 * n_sub)

    wh = jax.random.uniform(keys[0], (index_dim, index_dim),
                            minval=-bound, maxval=bound, dtype=jnp.float32)
    bh = jax.random.uniform(keys[1], (index_dim,),
                            minval=-bound, maxval=bound, dtype=jnp.float32)

    w_chunks, b_chunks = [], []
    ki = 2
    for sub_shapes in shapes:
        for s in sub_shapes:
            n = int(np.prod(s))
            w_chunks.append(jax.random.uniform(keys[ki], (index_dim, n),
                                               minval=-bound, maxval=bound,
                                               dtype=jnp.float32))
            b_chunks.append(jax.random.uniform(keys[ki + 1], (n,),
                                               minval=-bound, maxval=bound,
                                               dtype=jnp.float32))
            ki += 2
    w_all = jnp.concatenate(w_chunks, axis=1)      # (index_dim, total_out)
    b_all = jnp.concatenate(b_chunks, axis=0)      # (total_out,)

    total = w_all.shape[1]
    _, padded, _ = _tiling(total)
    pad = padded - total
    w_all = jnp.pad(w_all, ((0, 0), (0, pad)))
    b_all = jnp.pad(b_all, ((0, pad),))

    return (wh.astype(weight_dtype), bh,
            w_all.astype(weight_dtype), b_all)


@partial(jax.jit, static_argnames=("index_dim", "padded_total", "tile_n"))
def _run_kernel(x, wh, bh, w_all, b_all, *, index_dim, padded_total, tile_n):
    grid_n = padded_total // tile_n
    w_bytes = jnp.dtype(w_all.dtype).itemsize

    # Hoisted hyper layer: one tiny f32 mat-vec in XLA, cast to bf16 once.
    hyper = (
        jnp.dot(x.reshape(1, index_dim), wh.astype(jnp.float32),
                preferred_element_type=jnp.float32)
        + bh.reshape(1, index_dim)
    ).astype(jnp.bfloat16)

    cost = pl.CostEstimate(
        flops=int(2 * index_dim * padded_total),
        transcendentals=0,
        bytes_accessed=int(index_dim * padded_total * w_bytes   # streamed weights
                           + padded_total * 4 * 2               # bias + output
                           + grid_n * index_dim * 2),           # hyper refetch
    )

    out = pl.pallas_call(
        _hypertorso_kernel,
        out_shape=jax.ShapeDtypeStruct((1, padded_total), jnp.float32),
        grid=(grid_n,),
        in_specs=[
            pl.BlockSpec((1, index_dim), lambda j: (0, 0)),       # hyper (full)
            pl.BlockSpec((index_dim, tile_n), lambda j: (0, j)),  # w_all tile
            pl.BlockSpec((1, tile_n), lambda j: (0, j)),          # b_all tile
        ],
        out_specs=pl.BlockSpec((1, tile_n), lambda j: (0, j)),
        compiler_params=pltpu.CompilerParams(
            dimension_semantics=("parallel",),   # independent tiles -> 2 TCs on v7x
            vmem_limit_bytes=48 << 20,           # ~18 MiB used; explicit & safe on v5e/v6e/v7x
        ),
        cost_estimate=cost,
    )(
        hyper,
        w_all,
        b_all.reshape(1, padded_total),
    )
    return out[0]


def linear_hypertorso_forward(x, params, shapes):
    wh, bh, w_all, b_all = params
    index_dim = int(x.shape[0])
    total_out = _total_out(shapes)
    tile_n, padded_total, _ = _tiling(total_out)
    assert w_all.shape == (index_dim, padded_total), "params/shapes mismatch"

    flat = _run_kernel(x, wh, bh, w_all, b_all,
                       index_dim=index_dim,
                       padded_total=padded_total,
                       tile_n=tile_n)
    flat = flat[:total_out]

    # Glue (host-side): split the flat output into the nested list of tensors.
    result, off = [], 0
    for sub_shapes in shapes:
        sub = []
        for s in sub_shapes:
            n = int(np.prod(s))
            sub.append(flat[off:off + n].reshape(s))
            off += n
        result.append(sub)
    return result


def _reference_forward(x, params, shapes):
    """NumPy reference mimicking the kernel's precision policy.

    NOTE (documented numerics deviation vs. PyTorch f32 Linear chain): weights
    are stored in bf16 (upcast exactly here), the hyper activation is rounded to
    bf16 before the large mat-vec, accumulation is f32.
    """
    wh, bh, w_all, b_all = params
    xf = np.asarray(x, np.float32)
    whf = np.asarray(wh.astype(jnp.float32))
    bhf = np.asarray(bh, np.float32)
    wf = np.asarray(w_all.astype(jnp.float32))
    bf = np.asarray(b_all, np.float32)

    hyper = xf @ whf + bhf
    hyper = np.asarray(jnp.asarray(hyper).astype(jnp.bfloat16).astype(jnp.float32))
    flat = hyper @ wf + bf
    flat = flat[:_total_out(shapes)]

    out, off = [], 0
    for sub_shapes in shapes:
        sub = []
        for s in sub_shapes:
            n = int(np.prod(s))
            sub.append(flat[off:off + n].reshape(s))
            off += n
        out.append(sub)
    return out


if __name__ == "__main__":
    key = jax.random.PRNGKey(0)

    # Test 1: toy hypernetwork generating a 2-layer MLP (32->16->8); two small tiles.
    # Test 2: larger, non-128-multiple total_out exercising balanced multi-tile
    #         streaming with the 128-rounded (not tile-rounded) padding.
    tests = [
        (32, [[(16, 32), (16,)], [(8, 16), (8,)]]),
        (32, [[(130, 257)], [(64,)]]),
    ]

    for index_dim, shapes in tests:
        key, k_params, k_x = jax.random.split(key, 3)
        params = init_params(k_params, index_dim, shapes)
        x = jax.random.normal(k_x, (index_dim,), dtype=jnp.float32)

        result = linear_hypertorso_forward(x, params, shapes)
        jax.block_until_ready(jax.tree_util.tree_leaves(result))

        ref = _reference_forward(x, params, shapes)
        for sub_out, sub_ref in zip(result, ref):
            for o, r in zip(sub_out, sub_ref):
                assert o.shape == r.shape
                # Tolerance accounts for the bf16 rounding of the 32-term
                # contraction input; a semantic bug would produce O(1) errors.
                np.testing.assert_allclose(np.asarray(o), r, rtol=1e-2, atol=1e-2)

    print("KERNEL_OK")
</pallas_src>

<mosaic_0001>
module attributes {stable_mosaic.version = 11 : i64} {
  func.func @_hypertorso_kernel(%arg0: i32, %arg1: memref<1x32xbf16, #tpu.memory_space<vmem>>, %arg2: memref<32x384xbf16, #tpu.memory_space<vmem>>, %arg3: memref<1x384xf32, #tpu.memory_space<vmem>>, %arg4: memref<1x384xf32, #tpu.memory_space<vmem>>) attributes {dimension_semantics = [#tpu.dimension_semantics<parallel>], iteration_bounds = array<i64: 2>, scalar_prefetch = 0 : i64, scratch_operands = 0 : i64, tpu.core_type = #tpu.core_type<tc>, window_params = [{pipeline_mode = #tpu.pipeline_mode<synchronous>, transform_indices = @transform_0, window_bounds = array<i64: 1, 32>}, {transform_indices = @transform_1, window_bounds = array<i64: 32, 384>}, {transform_indices = @transform_2, window_bounds = array<i64: 1, 384>}, {transform_indices = @transform_3, window_bounds = array<i64: 1, 384>}]} {
    %c0 = arith.constant 0 : index
    %c0_0 = arith.constant 0 : index
    %0 = vector.load %arg1[%c0, %c0_0] : memref<1x32xbf16, #tpu.memory_space<vmem>>, vector<1x32xbf16>
    %c0_1 = arith.constant 0 : index
    %c0_2 = arith.constant 0 : index
    %1 = vector.load %arg2[%c0_1, %c0_2] : memref<32x384xbf16, #tpu.memory_space<vmem>>, vector<32x384xbf16>
    %cst = arith.constant dense<0.000000e+00> : vector<1x384xf32>
    %2 = tpu.matmul %0, %1, %cst {dimension_numbers = #tpu.dot_dimension_numbers<[1], [0], [0], [1], [0, 0, 1, 1], [], []>} : vector<1x32xbf16>, vector<32x384xbf16>, vector<1x384xf32> -> vector<1x384xf32>
    %c0_3 = arith.constant 0 : index
    %c0_4 = arith.constant 0 : index
    %3 = vector.load %arg3[%c0_3, %c0_4] : memref<1x384xf32, #tpu.memory_space<vmem>>, vector<1x384xf32>
    %4 = arith.addf %2, %3 : vector<1x384xf32>
    %c0_5 = arith.constant 0 : index
    %c0_6 = arith.constant 0 : index
    %5 = vector.load %arg4[%c0_5, %c0_6] : memref<1x384xf32, #tpu.memory_space<vmem>>, vector<1x384xf32>
    tpu.vector_store %arg4[%c0_5, %c0_6], %4 {strides = array<i32>} : memref<1x384xf32, #tpu.memory_space<vmem>>, vector<1x384xf32>,
    return
  }
  func.func @transform_0(%arg0: i32) -> (i32, i32) {
    %c0_i32 = arith.constant 0 : i32
    %c0_i32_0 = arith.constant 0 : i32
    %c0_i32_1 = arith.constant 0 : i32
    return %c0_i32, %c0_i32_0 : i32, i32
  }
  func.func @transform_1(%arg0: i32) -> (i32, i32) {
    %c0_i32 = arith.constant 0 : i32
    %c0_i32_0 = arith.constant 0 : i32
    return %c0_i32, %arg0 : i32, i32
  }
  func.func @transform_2(%arg0: i32) -> (i32, i32) {
    %c0_i32 = arith.constant 0 : i32
    %c0_i32_0 = arith.constant 0 : i32
    return %c0_i32, %arg0 : i32, i32
  }
  func.func @transform_3(%arg0: i32) -> (i32, i32) {
    %c0_i32 = arith.constant 0 : i32
    %c0_i32_0 = arith.constant 0 : i32
    return %c0_i32, %arg0 : i32, i32
  }
}

</mosaic_0001>

<llo_original>
// kernel: _run_kernel.1
$region0: #{_run_kernel.1}
  #allocation0 [shape = 'u32[]', space=smem, size = 0x4, offset = 0x4, fixed_abs, tag = 'smem constant byte address 0x4 - core index']
  #allocation1 [shape = 'u32[144,128]{1,0:T(1,128)}', space=vmem, size = 0x12000, scoped, tag = 'internal scratch']
  %s0 = inlined_call_operand.vmem [shape: bf16[1,32], index: 0, kind: input, shape index: {}]
  %s1 = inlined_call_operand.hbm [shape: bf16[32,768], index: 1, kind: input, shape index: {}]
  %s2 = inlined_call_operand.vmem [shape: f32[1,768], index: 2, kind: input, shape index: {}]
  %s3 = inlined_call_operand.vmem [shape: f32[1,768], index: 3, kind: output, shape index: {}]
  %s4 = sld [smem:[#allocation0]]
  $region49: #{_run_kernel.1} parent=0
    _
  %s6 = ssub.s32 1, %s4
  %s7 = scalar_select 0, %s6, %s4
  $region1: #{_run_kernel.1} parent=0
    #allocation2 [shape = 'u8[49152]{0}', space=vmem, size = 0xc000, scoped, tag = 'input window, operand 1']
    #allocation3 [shape = 's32[2]{0}', space=sflag, size = 0x8, scoped, tag = 'scoped memory for _run_kernel.1']
    %8 = vsyncpa [#allocation3], 0
    %s9 = scalar_lea.sflag [#allocation3], 1
    %10 = vsyncpa %s9, 0
    loop: start=0, step=1, limit=4
    $region2: #{_run_kernel.1} parent=1 // loop_pre_header
      _
    $region3: #{_run_kernel.1} parent=1 // loop_header
      %s12 = sphi 0, %s16
      %p13 = scmp.ge.s32.totalorder %s12, 4
      %s20 = sphi 0, %s20
      %s22 = sphi 0, %s20
      %s23 = sphi 0, %s22
      %s37 = sphi 0, %s23
      %s43 = sphi 0, %s45
      %s46 = sphi 0, %s43
      %s47 = sphi 0, %s46
      %s63 = sphi 0, %s47
      %s69 = sphi 0, %s71
      %s72 = sphi 0, %s69
      %s73 = sphi 0, %s72
      %s89 = sphi 0, %s73
      %s95 = sphi 0, %s97
      %s98 = sphi 0, %s95
      %s99 = sphi 0, %s98
      %s115 = sphi 0, %s99
    $region4: #{_run_kernel.1} parent=1 // loop_header_branch
      %15 = sbr.rel (%p13) target = $region8
    $region5: #{_run_kernel.1} parent=1 // loop_body
      %s17 = ssub.s32 %s12, 1
      %s18 = ssub.s32 %s12, 2
      %s19 = sadd.s32 %s12, 1
      %s21 = sadd.s32 %s20, 1
      %p24 = scmp.eq.s32.totalorder %s12, 1
      %p25 = scmp.ne.s32.totalorder %s20, %s22
      %p26 = scmp.eq.s32.totalorder %s12, 0
      %p27 = por %p25, %p26
      %p28 = scmp.ne.s32.totalorder %s20, %s22
      %p29 = scmp.eq.s32.totalorder %s17, 1
      %p30 = por %p28, %p29
      %p31 = scmp.ne.s32.totalorder %s22, %s23
      %p32 = scmp.eq.s32.totalorder %s17, 0
      %p33 = por %p31, %p32
      %p34 = scmp.ne.s32.totalorder %s22, %s23
      %p35 = scmp.eq.s32.totalorder %s18, 1
      %p36 = por %p34, %p35
      %p38 = scmp.ne.s32.totalorder %s23, %s37
      %p39 = scmp.eq.s32.totalorder %s18, 0
      %p40 = por %p38, %p39
      %s41 = ssub.s32 %s12, %s19
      %p42 = scmp.eq.s32.totalorder %s41, 0
      %s44 = sadd.s32 %s43, 1
      %s45 = scalar_select %p42, %s43, %s44
      %p48 = pneg %p42
      %p49 = scmp.eq.s32.totalorder %s12, 1
      %p50 = por %p48, %p49
      %p51 = scmp.ne.s32.totalorder %s43, %s46
      %p52 = scmp.eq.s32.totalorder %s12, 0
      %p53 = por %p51, %p52
      %p54 = scmp.ne.s32.totalorder %s43, %s46
      %p55 = scmp.eq.s32.totalorder %s17, 1
      %p56 = por %p54, %p55
      %p57 = scmp.ne.s32.totalorder %s46, %s47
      %p58 = scmp.eq.s32.totalorder %s17, 0
      %p59 = por %p57, %p58
      %p60 = scmp.ne.s32.totalorder %s46, %s47
      %p61 = scmp.eq.s32.totalorder %s18, 1
      %p62 = por %p60, %p61
      %p64 = scmp.ne.s32.totalorder %s47, %s63
      %p65 = scmp.eq.s32.totalorder %s18, 0
      %p66 = por %p64, %p65
      %s67 = ssub.s32 %s12, %s19
      %p68 = scmp.eq.s32.totalorder %s67, 0
      %s70 = sadd.s32 %s69, 1
      %s71 = scalar_select %p68, %s69, %s70
      %p74 = pneg %p68
      %p75 = scmp.eq.s32.totalorder %s12, 1
      %p76 = por %p74, %p75
      %p77 = scmp.ne.s32.totalorder %s69, %s72
      %p78 = scmp.eq.s32.totalorder %s12, 0
      %p79 = por %p77, %p78
      %p80 = scmp.ne.s32.totalorder %s69, %s72
      %p81 = scmp.eq.s32.totalorder %s17, 1
      %p82 = por %p80, %p81
      %p83 = scmp.ne.s32.totalorder %s72, %s73
      %p84 = scmp.eq.s32.totalorder %s17, 0
      %p85 = por %p83, %p84
      %p86 = scmp.ne.s32.totalorder %s72, %s73
      %p87 = scmp.eq.s32.totalorder %s18, 1
      %p88 = por %p86, %p87
      %p90 = scmp.ne.s32.totalorder %s73, %s89
      %p91 = scmp.eq.s32.totalorder %s18, 0
      %p92 = por %p90, %p91
      %s93 = ssub.s32 %s12, %s19
      %p94 = scmp.eq.s32.totalorder %s93, 0
      %s96 = sadd.s32 %s95, 1
      %s97 = scalar_select %p94, %s95, %s96
      %p100 = pneg %p94
      %p101 = scmp.eq.s32.totalorder %s12, 1
      %p102 = por %p100, %p101
      %p103 = scmp.ne.s32.totalorder %s95, %s98
      %p104 = scmp.eq.s32.totalorder %s12, 0
      %p105 = por %p103, %p104
      %p106 = scmp.ne.s32.totalorder %s95, %s98
      %p107 = scmp.eq.s32.totalorder %s17, 1
      %p108 = por %p106, %p107
      %p109 = scmp.ne.s32.totalorder %s98, %s99
      %p110 = scmp.eq.s32.totalorder %s17, 0
      %p111 = por %p109, %p110
      %p112 = scmp.ne.s32.totalorder %s98, %s99
      %p113 = scmp.eq.s32.totalorder %s18, 1
      %p114 = por %p112, %p113
      %p116 = scmp.ne.s32.totalorder %s99, %s115
      %p117 = scmp.eq.s32.totalorder %s18, 0
      %p118 = por %p116, %p117
      %p119 = scmp.le.s32.totalorder 1, %s12
      %p120 = scmp.lt.s32.totalorder %s12, 3
      %p121 = pnand %p119, %p120
      %p122 = pneg %p121
      // Predicated region
      $region9: #{_run_kernel.1} parent=5 // pred_check
        _
      $region10: #{_run_kernel.1} parent=5 // pred_check_branch
        %124 = sbr.rel (%p121) target = $region12
      $region11: #{_run_kernel.1} parent=5 // pred_region
        %s125 = ssub.s32 %s12, 1
        // Predicated region
        $region13: #{_run_kernel.1} parent=11 // pred_check
          %p126 = pneg %p33
        $region14: #{_run_kernel.1} parent=11 // pred_check_branch
          %128 = sbr.rel (%p126) target = $region16
        $region15: #{_run_kernel.1} parent=11 // pred_region
          _
        $region16: #{_run_kernel.1} parent=11 // pred_fallthru
          _
      $region12: #{_run_kernel.1} parent=5 // pred_fallthru
        _
      %p129 = scmp.lt.s32.totalorder %s12, 2
      // Predicated region
      $region17: #{_run_kernel.1} parent=5 // pred_check
        %p130 = pneg %p129
      $region18: #{_run_kernel.1} parent=5 // pred_check_branch
        %132 = sbr.rel (%p130) target = $region20
      $region19: #{_run_kernel.1} parent=5 // pred_region
        // Predicated region
        $region21: #{_run_kernel.1} parent=19 // pred_check
          %p133 = pneg %p53
        $region22: #{_run_kernel.1} parent=19 // pred_check_branch
          %135 = sbr.rel (%p133) target = $region24
        $region23: #{_run_kernel.1} parent=19 // pred_region
          %s136 = sand.u32 %s43, 1
          %s137 = scalar_lea.sflag [#allocation3], %s136
          %s138 = sand.u32 %s43, 1
          %s139 = smul.addr %s138, 48
          %s140 = scalar_lea.vmem [#allocation2], %s139
          %s141 = smul.u32 3, %s12
          %s143 = ssub.s32 768, 768
          %144 = vsyncadd %s137, %s143
          %s145 = smul.addr %s141, 64
          %s146 = scalar_lea.hbm %s1, %s145
          %s147 = sshll.u32 %s140, 4
          %s148 = int_to_ptr.vmem [resolvable:$true] %s147
          %153 = dma.hbm_to_vmem [thread:$0]  %s146, 768, %s148, %s137, 384, 192, 12
        $region24: #{_run_kernel.1} parent=19 // pred_fallthru
          _
        // Predicated region
        $region25: #{_run_kernel.1} parent=19 // pred_check
          %p154 = pneg %p79
        $region26: #{_run_kernel.1} parent=19 // pred_check_branch
          %156 = sbr.rel (%p154) target = $region28
        $region27: #{_run_kernel.1} parent=19 // pred_region
          %s157 = smul.u32 3, %s12
          %p158 = scmp.lt.s32.totalorder %s157, 5
          %s159 = scalar_select %p158, %s157, 5
          %s160 = scalar_lea.vmem %s2, %s159
          %s161 = smul.u32 3, %s12
        $region28: #{_run_kernel.1} parent=19 // pred_fallthru
          _
      $region20: #{_run_kernel.1} parent=5 // pred_fallthru
        _
      %p162 = scmp.le.s32.totalorder 1, %s12
      %p163 = scmp.lt.s32.totalorder %s12, 3
      %p164 = pnand %p162, %p163
      %p165 = pneg %p164
      // Predicated region
      $region29: #{_run_kernel.1} parent=5 // pred_check
        _
      $region30: #{_run_kernel.1} parent=5 // pred_check_branch
        %167 = sbr.rel (%p164) target = $region32
      $region31: #{_run_kernel.1} parent=5 // pred_region
        %s168 = ssub.s32 %s12, 1
        %s169 = sand.u32 %s46, 1
        %s170 = scalar_lea.sflag [#allocation3], %s169
        %s171 = sand.u32 %s46, 1
        %s172 = smul.addr %s171, 48
        %s173 = scalar_lea.vmem [#allocation2], %s172
        // Predicated region
        $region33: #{_run_kernel.1} parent=31 // pred_check
          %p174 = pneg %p59
        $region34: #{_run_kernel.1} parent=31 // pred_check_branch
          %176 = sbr.rel (%p174) target = $region36
        $region35: #{_run_kernel.1} parent=31 // pred_region
          %177 = dma.done %s170, 768
        $region36: #{_run_kernel.1} parent=31 // pred_fallthru
          _
        %p178 = pneg %p33
        %p179 = pneg %p30
        %s180 = sand.u32 %s46, 1
        %s181 = scalar_lea.sflag [#allocation3], %s180
        %s182 = sand.u32 %s46, 1
        %s183 = smul.addr %s182, 48
        %s184 = scalar_lea.vmem [#allocation2], %s183
        %p185 = pneg %p59
        %p186 = pneg %p56
        %s187 = smul.u32 3, %s17
        %p188 = scmp.lt.s32.totalorder %s187, 5
        %s189 = scalar_select %p188, %s187, 5
        %s190 = scalar_lea.vmem %s2, %s189
        %p191 = pneg %p85
        %p192 = pneg %p82
        %p193 = pneg %p111
        %p194 = pneg %p108
        %s195 = smul.u32 3, %s17
        %p196 = scmp.lt.s32.totalorder %s195, 5
        %s197 = scalar_select %p196, %s195, 5
        %s198 = scalar_lea.vmem %s3, %s197
        %s199 = smul.u32 3, %s17
        %s200 = smul.u32 3, %s17
        %p201 = scmp.lt.s32.totalorder %s200, 5
        %s202 = scalar_select %p201, %s200, 5
        %s203 = scalar_lea.vmem %s2, %s202
        %s204 = smul.u32 3, %s17
        %s205 = smul.u32 3, %s17
        %p206 = scmp.lt.s32.totalorder %s205, 5
        %s207 = scalar_select %p206, %s205, 5
        %s208 = scalar_lea.vmem %s3, %s207
        %s209 = smul.u32 3, %s17
        %v211 = vld [vmem:[%s0] sm:$0x1]
        %v212 = vld [vmem:[%s173] sm:$0xff]
        %v213 = vld [vmem:[%s173 + $0x8] sm:$0xf]
        %v214 = vld [vmem:[%s173 + $0xc] sm:$0xff]
        %v215 = vld [vmem:[%s173 + $0x14] sm:$0xf]
        %v216 = vld [vmem:[%s173 + $0x18] sm:$0xff]
        %v217 = vld [vmem:[%s173 + $0x20] sm:$0xf]
        %v218 = vld [vmem:[%s173 + $0x24] sm:$0xff]
        %v219 = vld [vmem:[%s173 + $0x2c] sm:$0xf]
        %v220 = vld [vmem:[%s203] sm:$0x7]
        %v229 = vunpack.c.l.b16 %v212
        %v230 = vunpack.c.h.b16 %v212
        %v231 = vunpack.c.l.b16 %v213
        %v232 = vunpack.c.l.b16 %v214
        %v233 = vunpack.c.h.b16 %v214
        %v234 = vunpack.c.l.b16 %v215
        %v235 = vunpack.c.l.b16 %v216
        %v236 = vunpack.c.h.b16 %v216
        %v237 = vunpack.c.l.b16 %v217
        %v238 = vunpack.c.l.b16 %v218
        %v239 = vunpack.c.h.b16 %v218
        %v240 = vunpack.c.l.b16 %v219
        %v241 = vpack.c.b16 %v232, %v229
        %v242 = vpack.c.b16 %v233, %v230
        %v243 = vpack.c.b16 %v234, %v231
        %v244 = vpack.c.b16 %v238, %v235
        %v245 = vpack.c.b16 %v239, %v236
        %v246 = vpack.c.b16 %v240, %v237
        %v254 = vlaneseq
        %v255 = vshrl.u32 %v254, 7
        %v256 = vsub.s32 0, %v255
        %v257 = vrot.slane %v220, %v256
        %v258 = vlaneseq
        %v259 = vshrl.u32 %v258, 7
        %v260 = vsub.s32 1, %v259
        %v261 = vrot.slane %v220, %v260
        %v262 = vlaneseq
        %v263 = vshrl.u32 %v262, 7
        %v264 = vsub.s32 2, %v263
        %v265 = vrot.slane %v220, %v264
        %vm269 = vcmask 261120
        %v271 = vsel %vm269, %v211, 0
        %273 = vmatprep.subr.bf16.mxu0 0
        %274 = vmatpush1.bf16.msra.mxu0 0
        %275 = vmatprep.subr.bf16.mxu0 0
        %276 = vmatpush1.bf16.msra.mxu0 0
        %277 = vmatprep.subr.bf16.mxu0 0
        %278 = vmatpush1.bf16.msra.mxu0 0
        %279 = vmatprep.subr.bf16.mxu0 0
        %280 = vmatpush1.bf16.msra.mxu0 0
        %281 = vmatprep.subr.bf16.mxu0 0
        %282 = vmatpush1.bf16.msra.mxu0 0
        %283 = vmatprep.subr.bf16.mxu0 0
        %284 = vmatpush1.bf16.msra.mxu0 0
        %285 = vmatprep.subr.bf16.mxu0 %v245
        %286 = vmatpush1.bf16.msra.mxu0 %v244
        %287 = vmatprep.subr.bf16.mxu0 %v242
        %288 = vmatpush1.bf16.msra.mxu0 %v241
        %289 = vmatprep.subr.bf16.mxu0 0
        %290 = vmatpush2.bf16.msra.mxu0 0
        %291 = vmatprep.subr.bf16.mxu0 0
        %292 = vmatpush2.bf16.msra.mxu0 0
        %293 = vmatprep.subr.bf16.mxu0 0
        %294 = vmatpush2.bf16.msra.mxu0 0
        %295 = vmatprep.subr.bf16.mxu0 0
        %296 = vmatpush2.bf16.msra.mxu0 0
        %297 = vmatprep.subr.bf16.mxu0 0
        %298 = vmatpush2.bf16.msra.mxu0 0
        %299 = vmatprep.subr.bf16.mxu0 0
        %300 = vmatpush2.bf16.msra.mxu0 0
        %301 = vmatprep.subr.bf16.mxu0 0
        %302 = vmatpush2.bf16.msra.mxu0 0
        %303 = vmatprep.subr.bf16.mxu0 0
        %304 = vmatpush2.bf16.msra.mxu0 0
        %305 = vmatprep.mubr.bf16.mxu0 0
        %306 = vmatmul.mubr.bf16.gmra.mxu0 %v271
        %v307 = vpop.f32.mrf.mxu0
        %v308 = vadd.f32 %v257, %v307
        %v309 = vpop.f32.mrf.mxu0
        %v310 = vadd.f32 %v261, %v309
        %v311 = vpop.f32.mrf.mxu0
        %v312 = vpop.f32.mrf.mxu0
        %313 = vdwg.mxu0
        %314 = vmatprep.subr.bf16.mxu0 0
        %315 = vmatpush1.bf16.msra.mxu0 0
        %316 = vmatprep.subr.bf16.mxu0 0
        %317 = vmatpush1.bf16.msra.mxu0 0
        %318 = vmatprep.subr.bf16.mxu0 0
        %319 = vmatpush1.bf16.msra.mxu0 0
        %320 = vmatprep.subr.bf16.mxu0 0
        %321 = vmatpush1.bf16.msra.mxu0 0
        %322 = vmatprep.subr.bf16.mxu0 0
        %323 = vmatpush1.bf16.msra.mxu0 0
        %324 = vmatprep.subr.bf16.mxu0 0
        %325 = vmatpush1.bf16.msra.mxu0 0
        %326 = vmatprep.subr.bf16.mxu0 0
        %327 = vmatpush1.bf16.msra.mxu0 %v246
        %328 = vmatprep.subr.bf16.mxu0 0
        %329 = vmatpush1.bf16.msra.mxu0 %v243
        %330 = vmatprep.subr.bf16.mxu0 0
        %331 = vmatpush2.bf16.msra.mxu0 0
        %332 = vmatprep.subr.bf16.mxu0 0
        %333 = vmatpush2.bf16.msra.mxu0 0
        %334 = vmatprep.subr.bf16.mxu0 0
        %335 = vmatpush2.bf16.msra.mxu0 0
        %336 = vmatprep.subr.bf16.mxu0 0
        %337 = vmatpush2.bf16.msra.mxu0 0
        %338 = vmatprep.subr.bf16.mxu0 0
        %339 = vmatpush2.bf16.msra.mxu0 0
        %340 = vmatprep.subr.bf16.mxu0 0
        %341 = vmatpush2.bf16.msra.mxu0 0
        %342 = vmatprep.subr.bf16.mxu0 0
        %343 = vmatpush2.bf16.msra.mxu0 0
        %344 = vmatprep.subr.bf16.mxu0 0
        %345 = vmatpush2.bf16.msra.mxu0 0
        %346 = vmatprep.mubr.bf16.mxu0 0
        %347 = vmatmul.mubr.bf16.gmra.mxu0 %v271
        %v348 = vpop.f32.mrf.mxu0
        %v349 = vadd.f32 %v265, %v348
        %v350 = vpop.f32.mrf.mxu0
        %v351 = vpop.f32.mrf.mxu0
        %v352 = vpop.f32.mrf.mxu0
        %353 = vdwg.mxu0
        %v357 = vcombine.low %v308, %v310
        %v359 = vunpack.c.l.s4 1966171168
        %v360 = vunpack.c.0.s8 %v359
        %v361 = vlaneseq
        %v362 = vshrl.u32 %v361, 7
        %v363 = vsub.s32 %v360, %v362
        %v364 = vrot.slane %v357, %v363
        %v366 = vunpack.c.l.s4 1966171168
        %v367 = vunpack.c.0.s8 %v366
        %v368 = vlaneseq
        %v369 = vshrl.u32 %v368, 7
        %v370 = vsub.s32 %v367, %v369
        %v371 = vrot.slane %v349, %v370
        %v372 = vcombine.low %v364, %v371
        %v374 = vunpack.c.l.s4 1966171168
        %v375 = vunpack.c.0.s8 %v374
        %v376 = vlaneseq
        %v377 = vshrl.u32 %v376, 7
        %v378 = vsub.s32 %v375, %v377
        %v379 = vrot.slane %v372, %v378
        %v381 = vlaneseq
        %vm382 = vcmp.ge.s32.totalorder %v381, 0
        %vm383 = vcmp.lt.s32.totalorder %v381, 384
        %vm384 = vmand %vm382, %vm383
        %385 = vst.msk [vmem:[%s208] sm:$0x7] %vm384, %v379
        %s386 = smul.u32 3, %s17
        %p387 = scmp.lt.s32.totalorder %s386, 5
        %s388 = scalar_select %p387, %s386, 5
        %s389 = scalar_lea.vmem %s3, %s388
        // Predicated region
        $region37: #{_run_kernel.1} parent=31 // pred_check
          %p390 = pneg %p108
        $region38: #{_run_kernel.1} parent=31 // pred_check_branch
          %392 = sbr.rel (%p390) target = $region40
        $region39: #{_run_kernel.1} parent=31 // pred_region
          %s393 = smul.u32 3, %s17
        $region40: #{_run_kernel.1} parent=31 // pred_fallthru
          _
      $region32: #{_run_kernel.1} parent=5 // pred_fallthru
        _
      %p394 = scmp.le.s32.totalorder 2, %s12
      // Predicated region
      $region41: #{_run_kernel.1} parent=5 // pred_check
        %p395 = pneg %p394
      $region42: #{_run_kernel.1} parent=5 // pred_check_branch
        %397 = sbr.rel (%p395) target = $region44
      $region43: #{_run_kernel.1} parent=5 // pred_region
        %s398 = ssub.s32 %s12, 2
        // Predicated region
        $region45: #{_run_kernel.1} parent=43 // pred_check
          %p399 = pneg %p114
        $region46: #{_run_kernel.1} parent=43 // pred_check_branch
          %401 = sbr.rel (%p399) target = $region48
        $region47: #{_run_kernel.1} parent=43 // pred_region
          %s402 = smul.u32 3, %s18
          %p403 = scmp.lt.s32.totalorder %s402, 5
          %s404 = scalar_select %p403, %s402, 5
          %s405 = scalar_lea.vmem %s3, %s404
        $region48: #{_run_kernel.1} parent=43 // pred_fallthru
          _
      $region44: #{_run_kernel.1} parent=5 // pred_fallthru
        _
    $region6: #{_run_kernel.1} parent=1 // loop_footer
      %s16 = sadd.s32 1, %s12
    $region7: #{_run_kernel.1} parent=1 // loop_footer_branch
      %11 = sbr.rel target = $region3
    $region8: #{_run_kernel.1} parent=1 // loop_exit
      _
    %406 = vsyncpa [#allocation3], 1
    %s407 = scalar_lea.sflag [#allocation3], 1
    %408 = vsyncpa %s407, 1

</llo_original>
